<compile_context>
chip_gen: v5e
topology: v5e:2x2
jax: 0.10.0
libtpu: 0.0.40
codegen_flags: <defaults>
</compile_context>

<pallas_src>
import functools

import jax
import jax.numpy as jnp
from jax import lax
from jax.experimental import pallas as pl
from jax.experimental.pallas import tpu as pltpu


def _round_up(x, m):
    return -(-x // m) * m


def _text_tokenizer_kernel(xpad_ref, w_ref, out_ref, *scratch, bb, l_out, l_pool,
                           conv_stride, pool_k, pool_s, pool_p, max_pool):
    # xpad_ref: (bb, L_xpad, E)  zero-padded input chunk (compute dtype)
    # w_ref:    (K, E, C)        conv weight, W_k = w_ref[k] (compute dtype)
    # out_ref:  (bb, L_pool, C)  output chunk (x.dtype)
    # scratch:  [(bb, rows_pad, C) f32] only when max_pool
    k_size, embed_dim, c_out = w_ref.shape

    # ---- conv: K shifted matmuls, all bb batch elements collapsed into one
    # (bb*L_out, E) @ (E, C) MXU matmul per tap, accumulated in f32. ----
    acc = None
    for k in range(k_size):
        if conv_stride == 1:
            xs = xpad_ref[:, pl.ds(k, l_out), :]                       # (bb, L_out, E)
        else:
            xs = xpad_ref[:, pl.ds(k, l_out, stride=conv_stride), :]
        xs2 = xs.reshape(bb * l_out, embed_dim)                        # (bb*L_out, E)
        contrib = jnp.dot(xs2, w_ref[k], preferred_element_type=jnp.float32)
        acc = contrib if acc is None else acc + contrib
    conv = acc.reshape(bb, l_out, c_out)                               # (bb, L_out, C) f32

    if not max_pool:
        out_ref[...] = conv.astype(out_ref.dtype)
        return

    (conv_scr,) = scratch                                              # (bb, rows_pad, C) f32
    rows_pad = conv_scr.shape[1]

    # -inf boundary rows (PyTorch max-pool padding), written in place.
    if pool_p > 0:
        conv_scr[:, 0:pool_p, :] = jnp.full((bb, pool_p, c_out), -jnp.inf,
                                            dtype=jnp.float32)
    tail = rows_pad - (pool_p + l_out)
    if tail > 0:
        conv_scr[:, pool_p + l_out:, :] = jnp.full((bb, tail, c_out), -jnp.inf,
                                                   dtype=jnp.float32)
    conv_scr[:, pool_p:pool_p + l_out, :] = conv

    # pooled[b, t] = max_k conv_scr[b, t*pool_s + k]
    # One batched strided sublane read per tap; single lane-dense block store.
    def window(k):
        if pool_s == 1:
            return conv_scr[:, pl.ds(k, l_pool), :]                    # (bb, L_pool, C)
        return conv_scr[:, pl.ds(k, l_pool, stride=pool_s), :]

    pooled = window(0)
    for k in range(1, pool_k):
        pooled = jnp.maximum(pooled, window(k))
    out_ref[...] = pooled.astype(out_ref.dtype)


def text_tokenizer_forward(x, weight, *, kernel_size, stride, padding,
                           pooling_kernel_size=3, pooling_stride=2,
                           pooling_padding=1, max_pool=True,
                           compute_dtype=jnp.float32, batch_block=8):
    """x: (B, L, E).  weight: PyTorch Conv2d weight (C_out, 1, K, E).

    Returns (out, mask) with out: (B, L_pool, C_out); mask is None.
    """
    # TODO(synk): forward_mask / mask != None branch (conv1d + maxpool1d over a
    # boolean mask) is not implemented; only the mask=None path is exercised.
    b, seq_len, embed_dim = x.shape
    c_out = weight.shape[0]
    assert weight.shape == (c_out, 1, kernel_size, embed_dim)

    l_out = (seq_len + 2 * padding - kernel_size) // stride + 1
    if max_pool:
        l_pool = (l_out + 2 * pooling_padding - pooling_kernel_size) // pooling_stride + 1
    else:
        l_pool = l_out

    # Zero-pad only the conv time dim; im2col is fused into the kernel.
    x_pad = jnp.pad(x, ((0, 0), (padding, padding), (0, 0))).astype(compute_dtype)
    l_xpad = seq_len + 2 * padding

    # Conv2d weight (C,1,K,E) -> (K, E, C): W_k = w_r[k].
    w_r = jnp.transpose(weight[:, 0, :, :], (1, 2, 0)).astype(compute_dtype)

    # Collapse the batch grid: up to `batch_block` batch elements per grid step.
    bb = max(1, min(b, batch_block))
    nb = pl.cdiv(b, bb)
    if nb * bb != b:
        x_pad = jnp.pad(x_pad, ((0, nb * bb - b), (0, 0), (0, 0)))

    rows = l_out + 2 * pooling_padding if max_pool else l_out
    rows_pad = _round_up(max(rows, 8), 8)

    kernel = functools.partial(
        _text_tokenizer_kernel, bb=bb, l_out=l_out, l_pool=l_pool,
        conv_stride=stride, pool_k=pooling_kernel_size, pool_s=pooling_stride,
        pool_p=pooling_padding, max_pool=max_pool)

    scratch_shapes = ([pltpu.VMEM((bb, rows_pad, c_out), jnp.float32)]
                      if max_pool else [])

    # TODO(synk): for very long sequences (v7x 64 MiB VMEM) add an L_out tile
    # axis ("arbitrary") with a VMEM accumulator instead of a full-L_out block.
    out = pl.pallas_call(
        kernel,
        out_shape=jax.ShapeDtypeStruct((nb * bb, l_pool, c_out), x.dtype),
        grid_spec=pltpu.PrefetchScalarGridSpec(
            num_scalar_prefetch=0,
            grid=(nb,),
            in_specs=[
                pl.BlockSpec((bb, l_xpad, embed_dim), lambda i: (i, 0, 0)),
                pl.BlockSpec((kernel_size, embed_dim, c_out), lambda i: (0, 0, 0)),
            ],
            out_specs=pl.BlockSpec((bb, l_pool, c_out), lambda i: (i, 0, 0)),
            scratch_shapes=scratch_shapes,
        ),
        compiler_params=pltpu.CompilerParams(
            dimension_semantics=("parallel",)),
    )(x_pad, w_r)

    if nb * bb != b:
        out = out[:b]
    return out, None


def _reference_forward(x, weight, *, kernel_size, stride, padding,
                       pooling_kernel_size, pooling_stride, pooling_padding,
                       max_pool):
    """Pure-JAX reference mirroring the PyTorch module."""
    xn = x[:, None, :, :]                                             # (B,1,L,E) NCHW
    conv = lax.conv_general_dilated(
        xn, weight, window_strides=(stride, 1),
        padding=((padding, padding), (0, 0)),
        dimension_numbers=('NCHW', 'OIHW', 'NCHW'))                   # (B,C,L_out,1)
    if max_pool:
        conv = lax.reduce_window(
            conv, -jnp.inf, lax.max,
            window_dimensions=(1, 1, pooling_kernel_size, 1),
            window_strides=(1, 1, pooling_stride, 1),
            padding=((0, 0), (0, 0), (pooling_padding, pooling_padding), (0, 0)))
    # x.transpose(1, 3).squeeze(1): (B,C,Lp,1) -> (B,Lp,C)
    return jnp.transpose(conv, (0, 3, 2, 1))[:, 0]


if __name__ == "__main__":
    # Small shapes consistent with the module's forward: x is (B, seq, embed).
    B, SEQ, EMB = 2, 16, 32
    C_OUT = 128
    KERNEL, STRIDE, PAD = 3, 1, 1
    POOL_K, POOL_S, POOL_P = 3, 2, 1

    key = jax.random.PRNGKey(0)
    kx, kw = jax.random.split(key)
    x = jax.random.normal(kx, (B, SEQ, EMB), dtype=jnp.float32)

    # Deterministic kaiming_normal_ init of Conv2d weight (C_out, 1, K, E).
    fan_in = 1 * KERNEL * EMB
    std = (2.0 / fan_in) ** 0.5
    weight = jax.random.normal(kw, (C_OUT, 1, KERNEL, EMB), dtype=jnp.float32) * std

    common = dict(kernel_size=KERNEL, stride=STRIDE, padding=PAD,
                  pooling_kernel_size=POOL_K, pooling_stride=POOL_S,
                  pooling_padding=POOL_P)

    # f32 path (tight tolerance).
    ref = jax.block_until_ready(_reference_forward(x, weight, max_pool=True, **common))
    out, mask = text_tokenizer_forward(x, weight, max_pool=True, **common)
    out = jax.block_until_ready(out)
    assert mask is None
    assert out.shape == ref.shape == (B, (SEQ + 2 * POOL_P - POOL_K) // POOL_S + 1, C_OUT)
    assert jnp.allclose(out, ref, atol=1e-4, rtol=1e-4), "f32 mismatch vs reference"

    # bf16 MXU operands (v5e/v6e/v7x perf path), f32 accumulation — loose tol.
    out_bf16, _ = text_tokenizer_forward(x, weight, max_pool=True,
                                         compute_dtype=jnp.bfloat16, **common)
    out_bf16 = jax.block_until_ready(out_bf16)
    assert jnp.allclose(out_bf16, ref, atol=1e-1, rtol=1e-1), "bf16 mismatch vs reference"

    # max_pool=False path.
    ref_np = jax.block_until_ready(_reference_forward(x, weight, max_pool=False, **common))
    out_np, _ = text_tokenizer_forward(x, weight, max_pool=False, **common)
    out_np = jax.block_until_ready(out_np)
    assert out_np.shape == ref_np.shape
    assert jnp.allclose(out_np, ref_np, atol=1e-4, rtol=1e-4), "no-pool mismatch vs reference"

    print("KERNEL_OK")
</pallas_src>

<mosaic_0001>
module attributes {stable_mosaic.version = 11 : i64} {
  func.func @_text_tokenizer_kernel(%arg0: i32, %arg1: memref<2x18x32xf32, #tpu.memory_space<vmem>>, %arg2: memref<3x32x128xf32, #tpu.memory_space<vmem>>, %arg3: memref<2x8x128xf32, #tpu.memory_space<vmem>>, %arg4: memref<2x24x128xf32, #tpu.memory_space<vmem>>) attributes {dimension_semantics = [#tpu.dimension_semantics<parallel>], iteration_bounds = array<i64: 1>, scalar_prefetch = 0 : i64, scratch_operands = 1 : i64, tpu.core_type = #tpu.core_type<tc>, window_params = [{transform_indices = @transform_0, window_bounds = array<i64: 2, 18, 32>}, {pipeline_mode = #tpu.pipeline_mode<synchronous>, transform_indices = @transform_1, window_bounds = array<i64: 3, 32, 128>}, {transform_indices = @transform_2, window_bounds = array<i64: 2, 8, 128>}]} {
    %c0 = arith.constant 0 : index
    %c0_0 = arith.constant 0 : index
    %c0_1 = arith.constant 0 : index
    %0 = vector.load %arg1[%c0, %c0_0, %c0_1] : memref<2x18x32xf32, #tpu.memory_space<vmem>>, vector<2x16x32xf32>
    %1 = vector.shape_cast %0 : vector<2x16x32xf32> to vector<32x32xf32>
    %c0_2 = arith.constant 0 : index
    %c0_3 = arith.constant 0 : index
    %c0_4 = arith.constant 0 : index
    %2 = vector.load %arg2[%c0_2, %c0_3, %c0_4] : memref<3x32x128xf32, #tpu.memory_space<vmem>>, vector<1x32x128xf32>
    %3 = vector.shape_cast %2 : vector<1x32x128xf32> to vector<32x128xf32>
    %cst = arith.constant dense<0.000000e+00> : vector<32x128xf32>
    %4 = tpu.matmul %1, %3, %cst {dimension_numbers = #tpu.dot_dimension_numbers<[1], [0], [0], [1], [0, 0, 1, 1], [], []>} : vector<32x32xf32>, vector<32x128xf32>, vector<32x128xf32> -> vector<32x128xf32>
    %c0_5 = arith.constant 0 : index
    %c1 = arith.constant 1 : index
    %c0_6 = arith.constant 0 : index
    %5 = vector.load %arg1[%c0_5, %c1, %c0_6] : memref<2x18x32xf32, #tpu.memory_space<vmem>>, vector<2x16x32xf32>
    %6 = vector.shape_cast %5 : vector<2x16x32xf32> to vector<32x32xf32>
    %c1_7 = arith.constant 1 : index
    %c0_8 = arith.constant 0 : index
    %c0_9 = arith.constant 0 : index
    %7 = vector.load %arg2[%c1_7, %c0_8, %c0_9] : memref<3x32x128xf32, #tpu.memory_space<vmem>>, vector<1x32x128xf32>
    %8 = vector.shape_cast %7 : vector<1x32x128xf32> to vector<32x128xf32>
    %cst_10 = arith.constant dense<0.000000e+00> : vector<32x128xf32>
    %9 = tpu.matmul %6, %8, %cst_10 {dimension_numbers = #tpu.dot_dimension_numbers<[1], [0], [0], [1], [0, 0, 1, 1], [], []>} : vector<32x32xf32>, vector<32x128xf32>, vector<32x128xf32> -> vector<32x128xf32>
    %10 = arith.addf %4, %9 : vector<32x128xf32>
    %c0_11 = arith.constant 0 : index
    %c2 = arith.constant 2 : index
    %c0_12 = arith.constant 0 : index
    %11 = vector.load %arg1[%c0_11, %c2, %c0_12] : memref<2x18x32xf32, #tpu.memory_space<vmem>>, vector<2x16x32xf32>
    %12 = vector.shape_cast %11 : vector<2x16x32xf32> to vector<32x32xf32>
    %c2_13 = arith.constant 2 : index
    %c0_14 = arith.constant 0 : index
    %c0_15 = arith.constant 0 : index
    %13 = vector.load %arg2[%c2_13, %c0_14, %c0_15] : memref<3x32x128xf32, #tpu.memory_space<vmem>>, vector<1x32x128xf32>
    %14 = vector.shape_cast %13 : vector<1x32x128xf32> to vector<32x128xf32>
    %cst_16 = arith.constant dense<0.000000e+00> : vector<32x128xf32>
    %15 = tpu.matmul %12, %14, %cst_16 {dimension_numbers = #tpu.dot_dimension_numbers<[1], [0], [0], [1], [0, 0, 1, 1], [], []>} : vector<32x32xf32>, vector<32x128xf32>, vector<32x128xf32> -> vector<32x128xf32>
    %16 = arith.addf %10, %15 : vector<32x128xf32>
    %17 = vector.shape_cast %16 : vector<32x128xf32> to vector<2x16x128xf32>
    %cst_17 = arith.constant 0xFF800000 : f32
    %18 = vector.broadcast %cst_17 : f32 to vector<2x1x128xf32>
    %c0_18 = arith.constant 0 : index
    %c0_19 = arith.constant 0 : index
    %c0_20 = arith.constant 0 : index
    %19 = vector.load %arg4[%c0_18, %c0_19, %c0_20] : memref<2x24x128xf32, #tpu.memory_space<vmem>>, vector<2x1x128xf32>
    tpu.vector_store %arg4[%c0_18, %c0_19, %c0_20], %18 {strides = array<i32>} : memref<2x24x128xf32, #tpu.memory_space<vmem>>, vector<2x1x128xf32>,
    %cst_21 = arith.constant 0xFF800000 : f32
    %20 = vector.broadcast %cst_21 : f32 to vector<2x7x128xf32>
    %c0_22 = arith.constant 0 : index
    %c17 = arith.constant 17 : index
    %c0_23 = arith.constant 0 : index
    %21 = vector.load %arg4[%c0_22, %c17, %c0_23] : memref<2x24x128xf32, #tpu.memory_space<vmem>>, vector<2x7x128xf32>
    tpu.vector_store %arg4[%c0_22, %c17, %c0_23], %20 {strides = array<i32>} : memref<2x24x128xf32, #tpu.memory_space<vmem>>, vector<2x7x128xf32>,
    %c0_24 = arith.constant 0 : index
    %c1_25 = arith.constant 1 : index
    %c0_26 = arith.constant 0 : index
    %22 = vector.load %arg4[%c0_24, %c1_25, %c0_26] : memref<2x24x128xf32, #tpu.memory_space<vmem>>, vector<2x16x128xf32>
    tpu.vector_store %arg4[%c0_24, %c1_25, %c0_26], %17 {strides = array<i32>} : memref<2x24x128xf32, #tpu.memory_space<vmem>>, vector<2x16x128xf32>,
    %c0_27 = arith.constant 0 : index
    %c0_28 = arith.constant 0 : index
    %c0_29 = arith.constant 0 : index
    %23 = tpu.strided_load %arg4[%c0_27, %c0_28, %c0_29] {strides = array<i32: 1, 2, 1>} : memref<2x24x128xf32, #tpu.memory_space<vmem>>, vector<2x8x128xf32>
    %c0_30 = arith.constant 0 : index
    %c1_31 = arith.constant 1 : index
    %c0_32 = arith.constant 0 : index
    %24 = tpu.strided_load %arg4[%c0_30, %c1_31, %c0_32] {strides = array<i32: 1, 2, 1>} : memref<2x24x128xf32, #tpu.memory_space<vmem>>, vector<2x8x128xf32>
    %25 = arith.maximumf %23, %24 : vector<2x8x128xf32>
    %c0_33 = arith.constant 0 : index
    %c2_34 = arith.constant 2 : index
    %c0_35 = arith.constant 0 : index
    %26 = tpu.strided_load %arg4[%c0_33, %c2_34, %c0_35] {strides = array<i32: 1, 2, 1>} : memref<2x24x128xf32, #tpu.memory_space<vmem>>, vector<2x8x128xf32>
    %27 = arith.maximumf %25, %26 : vector<2x8x128xf32>
    %c0_36 = arith.constant 0 : index
    %c0_37 = arith.constant 0 : index
    %c0_38 = arith.constant 0 : index
    %28 = vector.load %arg3[%c0_36, %c0_37, %c0_38] : memref<2x8x128xf32, #tpu.memory_space<vmem>>, vector<2x8x128xf32>
    tpu.vector_store %arg3[%c0_36, %c0_37, %c0_38], %27 {strides = array<i32>} : memref<2x8x128xf32, #tpu.memory_space<vmem>>, vector<2x8x128xf32>,
    return
  }
  func.func @transform_0(%arg0: i32) -> (i32, i32, i32) {
    %c0_i32 = arith.constant 0 : i32
    %c0_i32_0 = arith.constant 0 : i32
    %c0_i32_1 = arith.constant 0 : i32
    return %arg0, %c0_i32, %c0_i32_0 : i32, i32, i32
  }
  func.func @transform_1(%arg0: i32) -> (i32, i32, i32) {
    %c0_i32 = arith.constant 0 : i32
    %c0_i32_0 = arith.constant 0 : i32
    %c0_i32_1 = arith.constant 0 : i32
    %c0_i32_2 = arith.constant 0 : i32
    return %c0_i32, %c0_i32_0, %c0_i32_1 : i32, i32, i32
  }
  func.func @transform_2(%arg0: i32) -> (i32, i32, i32) {
    %c0_i32 = arith.constant 0 : i32
    %c0_i32_0 = arith.constant 0 : i32
    %c0_i32_1 = arith.constant 0 : i32
    return %arg0, %c0_i32, %c0_i32_0 : i32, i32, i32
  }
}

</mosaic_0001>

<llo_original>
// kernel: tpu_custom_call.1
$region0: #{tpu_custom_call.1}
  #allocation0 [shape = 'u32[]', space=smem, size = 0x4, offset = 0x4, fixed_abs, tag = 'smem constant byte address 0x4 - core index']
  #allocation1 [shape = 'u32[72,128]{1,0:T(1,128)}', space=vmem, size = 0x9000, scoped, tag = 'internal scratch']
  #allocation2 [shape = 'f32[2,24,128]{2,1,0:T(8,128)}', space=vmem, size = 0x6000, scoped, tag = 'scratch operand']
  %s0 = inlined_call_operand.vmem [shape: f32[2,18,32], index: 0, kind: input, shape index: {}]
  %s1 = inlined_call_operand.hbm [shape: f32[3,32,128], index: 1, kind: input, shape index: {}]
  %s2 = inlined_call_operand.hbm [shape: f32[2,8,128], index: 2, kind: output, shape index: {}]
  %s3 = sld [smem:[#allocation0]]
  $region22: #{tpu_custom_call.1} parent=0
    _
  %s5 = ssub.s32 1, %s3
  %s6 = scalar_select 0, %s5, %s3
  $region1: #{tpu_custom_call.1} parent=0
    #allocation3 [shape = 'u8[49152]{0}', space=vmem, size = 0xc000, scoped, tag = 'input window, operand 1, single buffered']
    #allocation4 [shape = 's32[1]{0}', space=sflag, size = 0x4, scoped, tag = 'scoped memory for tpu_custom_call.1']
    #allocation5 [shape = 's32[1]{0}', space=sflag, size = 0x4, scoped, tag = 'scoped memory for tpu_custom_call.1']
    #allocation6 [shape = 'u8[8192]{0}', space=vmem, size = 0x2000, scoped, tag = 'output window, operand 0, single buffered']
    %7 = vsyncpa [#allocation4], 0
    %8 = vsyncpa [#allocation5], 0
    // Predicated region
    $region2: #{tpu_custom_call.1} parent=1 // pred_check
      _
    $region3: #{tpu_custom_call.1} parent=1 // pred_check_branch
      %10 = sbr.rel (0) target = $region5
    $region4: #{tpu_custom_call.1} parent=1 // pred_region
      _
    $region5: #{tpu_custom_call.1} parent=1 // pred_fallthru
      _
    // Predicated region
    $region6: #{tpu_custom_call.1} parent=1 // pred_check
      _
    $region7: #{tpu_custom_call.1} parent=1 // pred_check_branch
      %12 = sbr.rel (0) target = $region9
    $region8: #{tpu_custom_call.1} parent=1 // pred_region
      %14 = vsyncadd [#allocation4], 0
      %s15 = sshll.u32 %s1, 4
      %s16 = int_to_ptr.hbm [resolvable:$true] %s15
      %s17 = sshll.u32 [#allocation3], 4
      %s18 = int_to_ptr.vmem [resolvable:$true] %s17
      %23 = dma.hbm_to_vmem [thread:$0]  %s16, 1536, %s18, [#allocation4], 128, 128, 8
    $region9: #{tpu_custom_call.1} parent=1 // pred_fallthru
      _
    // Predicated region
    $region10: #{tpu_custom_call.1} parent=1 // pred_check
      _
    $region11: #{tpu_custom_call.1} parent=1 // pred_check_branch
      %25 = sbr.rel (0) target = $region13
    $region12: #{tpu_custom_call.1} parent=1 // pred_region
      %27 = dma.done [#allocation4], 1536
    $region13: #{tpu_custom_call.1} parent=1 // pred_fallthru
      _
    %v28 = vld [vmem:[%s0] sm:$0xff]
    %v29 = vld [vmem:[%s0 + $0x8] sm:$0xff]
    %v30 = vld [vmem:[%s0 + $0x18] sm:$0xff]
    %v31 = vld [vmem:[%s0 + $0x20] sm:$0xff]
    %v32 = vld [vmem:[#allocation3] sm:$0xff]
    %v33 = vld [vmem:[#allocation3 + $0x8] sm:$0xff]
    %v34 = vld [vmem:[#allocation3 + $0x10] sm:$0xff]
    %v35 = vld [vmem:[#allocation3 + $0x18] sm:$0xff]
    %v36 = vld [vmem:[%s0 + $0x1] sm:$0xff]
    %v37 = vld [vmem:[%s0 + $0x9] sm:$0xff]
    %v38 = vld [vmem:[%s0 + $0x19] sm:$0xff]
    %v39 = vld [vmem:[%s0 + $0x21] sm:$0xff]
    %s40 = scalar_lea.vmem [#allocation3], 32
    %v41 = vld [vmem:[%s40] sm:$0xff]
    %v42 = vld [vmem:[%s40 + $0x8] sm:$0xff]
    %v43 = vld [vmem:[%s40 + $0x10] sm:$0xff]
    %v44 = vld [vmem:[%s40 + $0x18] sm:$0xff]
    %vm45 = vcmask 261120
    %v47 = vsel %vm45, %v36, 0
    %v50 = vsel %vm45, %v37, 0
    %v53 = vsel %vm45, %v38, 0
    %v56 = vsel %vm45, %v39, 0
    %58 = vmatpush.msra.mxu0 0.0
    %59 = vmatpush.msra.mxu0 0.0
    %60 = vmatpush.msra.mxu0 0.0
    %61 = vmatpush.msra.mxu0 0.0
    %62 = vmatpush.msra.mxu0 0.0
    %63 = vmatpush.msra.mxu0 0.0
    %64 = vmatpush.msra.mxu0 0.0
    %65 = vmatpush.msra.mxu0 0.0
    %66 = vmatpush.msra.mxu0 0.0
    %67 = vmatpush.msra.mxu0 0.0
    %68 = vmatpush.msra.mxu0 0.0
    %69 = vmatpush.msra.mxu0 0.0
    %70 = vmatpush.msra.mxu0 %v44
    %71 = vmatpush.msra.mxu0 %v43
    %72 = vmatpush.msra.mxu0 %v42
    %73 = vmatpush.msra.mxu0 %v41
    %74 = vmatmul.f32.gmra.mxu0 %v47
    %v75 = vpop.f32.mrf.mxu0
    %v76 = vadd.f32 0.0, %v75
    %77 = vmatmul.f32.gmra.mxu0 %v50
    %v78 = vpop.f32.mrf.mxu0
    %v79 = vadd.f32 0.0, %v78
    %80 = vmatmul.f32.gmra.mxu0 %v53
    %v81 = vpop.f32.mrf.mxu0
    %v82 = vadd.f32 0.0, %v81
    %83 = vmatmul.f32.gmra.mxu0 %v56
    %v84 = vpop.f32.mrf.mxu0
    %v85 = vadd.f32 0.0, %v84
    %86 = vdwg.mxu0
    %v88 = vsel %vm45, %v28, 0
    %v91 = vsel %vm45, %v29, 0
    %v94 = vsel %vm45, %v30, 0
    %v97 = vsel %vm45, %v31, 0
    %99 = vmatpush.msra.mxu0 0.0
    %100 = vmatpush.msra.mxu0 0.0
    %101 = vmatpush.msra.mxu0 0.0
    %102 = vmatpush.msra.mxu0 0.0
    %103 = vmatpush.msra.mxu0 0.0
    %104 = vmatpush.msra.mxu0 0.0
    %105 = vmatpush.msra.mxu0 0.0
    %106 = vmatpush.msra.mxu0 0.0
    %107 = vmatpush.msra.mxu0 0.0
    %108 = vmatpush.msra.mxu0 0.0
    %109 = vmatpush.msra.mxu0 0.0
    %110 = vmatpush.msra.mxu0 0.0
    %111 = vmatpush.msra.mxu0 %v35
    %112 = vmatpush.msra.mxu0 %v34
    %113 = vmatpush.msra.mxu0 %v33
    %114 = vmatpush.msra.mxu0 %v32
    %115 = vmatmul.f32.gmra.mxu0 %v88
    %v116 = vpop.f32.mrf.mxu0
    %v117 = vadd.f32 %v76, %v116
    %118 = vmatmul.f32.gmra.mxu0 %v91
    %v119 = vpop.f32.mrf.mxu0
    %v120 = vadd.f32 %v79, %v119
    %121 = vmatmul.f32.gmra.mxu0 %v94
    %v122 = vpop.f32.mrf.mxu0
    %v123 = vadd.f32 %v82, %v122
    %124 = vmatmul.f32.gmra.mxu0 %v97
    %v125 = vpop.f32.mrf.mxu0
    %v126 = vadd.f32 %v85, %v125
    %127 = vdwg.mxu0
    %v128 = vld [vmem:[%s0 + $0x2] sm:$0xff]
    %v129 = vld [vmem:[%s0 + $0xa] sm:$0xff]
    %v130 = vld [vmem:[%s0 + $0x1a] sm:$0xff]
    %v131 = vld [vmem:[%s0 + $0x22] sm:$0xff]
    %s132 = scalar_lea.vmem [#allocation3], 64
    %v133 = vld [vmem:[%s132] sm:$0xff]
    %v134 = vld [vmem:[%s132 + $0x8] sm:$0xff]
    %v135 = vld [vmem:[%s132 + $0x10] sm:$0xff]
    %v136 = vld [vmem:[%s132 + $0x18] sm:$0xff]
    %v138 = vsel %vm45, %v128, 0
    %v141 = vsel %vm45, %v129, 0
    %v144 = vsel %vm45, %v130, 0
    %v147 = vsel %vm45, %v131, 0
    %149 = vmatpush.msra.mxu0 0.0
    %150 = vmatpush.msra.mxu0 0.0
    %151 = vmatpush.msra.mxu0 0.0
    %152 = vmatpush.msra.mxu0 0.0
    %153 = vmatpush.msra.mxu0 0.0
    %154 = vmatpush.msra.mxu0 0.0
    %155 = vmatpush.msra.mxu0 0.0
    %156 = vmatpush.msra.mxu0 0.0
    %157 = vmatpush.msra.mxu0 0.0
    %158 = vmatpush.msra.mxu0 0.0
    %159 = vmatpush.msra.mxu0 0.0
    %160 = vmatpush.msra.mxu0 0.0
    %161 = vmatpush.msra.mxu0 %v136
    %162 = vmatpush.msra.mxu0 %v135
    %163 = vmatpush.msra.mxu0 %v134
    %164 = vmatpush.msra.mxu0 %v133
    %165 = vmatmul.f32.gmra.mxu0 %v138
    %v166 = vpop.f32.mrf.mxu0
    %v167 = vadd.f32 0.0, %v166
    %168 = vmatmul.f32.gmra.mxu0 %v141
    %v169 = vpop.f32.mrf.mxu0
    %v170 = vadd.f32 0.0, %v169
    %171 = vmatmul.f32.gmra.mxu0 %v144
    %v172 = vpop.f32.mrf.mxu0
    %v173 = vadd.f32 0.0, %v172
    %174 = vmatmul.f32.gmra.mxu0 %v147
    %v175 = vpop.f32.mrf.mxu0
    %v176 = vadd.f32 0.0, %v175
    %177 = vdwg.mxu0
    %v178 = vadd.f32 %v117, %v167
    %v179 = vadd.f32 %v120, %v170
    %v180 = vadd.f32 %v123, %v173
    %v181 = vadd.f32 %v126, %v176
    %182 = vst [vmem:[#allocation2] sm:$0x1] -inf
    %183 = vst [vmem:[#allocation2 + $0x18] sm:$0x1] -inf
    %184 = vst [vmem:[#allocation2 + $0x11] sm:$0x7f] -inf
    %185 = vst [vmem:[#allocation2 + $0x29] sm:$0x7f] -inf
    %186 = vst [vmem:[#allocation2 + $0x1] sm:$0xff] %v178
    %187 = vst [vmem:[#allocation2 + $0x9] sm:$0xff] %v179
    %188 = vst [vmem:[#allocation2 + $0x19] sm:$0xff] %v180
    %189 = vst [vmem:[#allocation2 + $0x21] sm:$0xff] %v181
    %v190 = vld [vmem:[#allocation2] ss:$2 sm:$0xff]
    %s191 = scalar_lea.vmem [#allocation2], 24
    %v192 = vld [vmem:[%s191] ss:$2 sm:$0xff]
    %s193 = scalar_lea.vmem [#allocation2], 1
    %v194 = vld [vmem:[%s193] ss:$2 sm:$0xff]
    %s195 = scalar_lea.vmem [#allocation2], 25
    %v196 = vld [vmem:[%s195] ss:$2 sm:$0xff]
    %v197 = vmax.f32 %v190, %v194
    %v198 = vmax.f32 %v192, %v196
    %s199 = scalar_lea.vmem [#allocation2], 2
    %v200 = vld [vmem:[%s199] ss:$2 sm:$0xff]
    %s201 = scalar_lea.vmem [#allocation2], 26
    %v202 = vld [vmem:[%s201] ss:$2 sm:$0xff]
    %v203 = vmax.f32 %v197, %v200
    %v204 = vmax.f32 %v198, %v202
    %205 = vst [vmem:[#allocation6] sm:$0xff] %v203
    %206 = vst [vmem:[#allocation6 + $0x8] sm:$0xff] %v204
    // Predicated region
    $region14: #{tpu_custom_call.1} parent=1 // pred_check
      _
    $region15: #{tpu_custom_call.1} parent=1 // pred_check_branch
      %208 = sbr.rel (0) target = $region17
    $region16: #{tpu_custom_call.1} parent=1 // pred_region
      %210 = vsyncadd [#allocation5], 0
      %s211 = sshll.u32 [#allocation6], 4
      %s212 = int_to_ptr.vmem [resolvable:$true] %s211
      %s213 = sshll.u32 %s2, 4
      %s214 = int_to_ptr.hbm [resolvable:$true] %s213
      %219 = dma.vmem_to_hbm [thread:$0]  %s212, 256, %s214, [#allocation5], 128, 128, 8
    $region17: #{tpu_custom_call.1} parent=1 // pred_fallthru
      _
    // Predicated region
    $region18: #{tpu_custom_call.1} parent=1 // pred_check
      _
    $region19: #{tpu_custom_call.1} parent=1 // pred_check_branch
      %221 = sbr.rel (0) target = $region21
    $region20: #{tpu_custom_call.1} parent=1 // pred_region
      %223 = dma.done [#allocation5], 256
    $region21: #{tpu_custom_call.1} parent=1 // pred_fallthru
      _
    %224 = vsyncpa [#allocation4], 1
    %225 = vsyncpa [#allocation5], 1

</llo_original>
